<compile_context>
chip_gen: v7x
topology: tpu7x:2x2x1
jax: 0.10.0
libtpu: 0.0.40
codegen_flags: <defaults>
</compile_context>

<pallas_src>
import jax
import jax.numpy as jnp
import numpy as np
from jax import lax
from jax.experimental import pallas as pl
from jax.experimental.pallas import tpu as pltpu


def _basic_block_kernel(x_ref, w2a_ref, b2a_ref, w2b_ref, b2b_ref, o_ref):
    # x_ref  : (NB, H, W*Cin)      f32   NB images, channels folded into lanes
    # w2a_ref: (3*W*Cin,  W*Cout)  bf16  banded conv weights, kh taps stacked on K,
    #                                    BN scale pre-folded into the Cout columns
    # b2a_ref: (1, W*Cout)         f32   folded BN bias (tiled over W)
    # w2b_ref: (3*W*Cout, W*Cout)  bf16
    # b2b_ref: (1, W*Cout)         f32
    # o_ref  : (NB, H, W*Cout)     f32
    NB, H, WC = x_ref.shape
    M = NB * H

    # Per-image halo masks (rows are stacked image-major along the matmul M axis).
    row = lax.broadcasted_iota(jnp.int32, (M, 1), 0)
    top = (row % H) == 0          # h == 0   -> x[h-1] is zero padding
    bot = (row % H) == (H - 1)    # h == H-1 -> x[h+1] is zero padding

    def conv_operand(xb):
        # xb: (M, WC) bf16 -> (M, 3*WC) bf16 operand [x[h-1] | x[h] | x[h+1]].
        # One zero-padded row shift + boundary masks give the H-direction halo both at
        # the block edges and between the NB images stacked along M.  (W-direction
        # padding is baked into the banded weights.)
        zero = jnp.zeros((1, xb.shape[1]), xb.dtype)
        xpad = jnp.concatenate([zero, xb, zero], axis=0)          # (M+2, WC)
        up = jnp.where(top, jnp.zeros_like(xb), xpad[0:M])        # row h-1
        dn = jnp.where(bot, jnp.zeros_like(xb), xpad[2:M + 2])    # row h+1
        return jnp.concatenate([up, xb, dn], axis=1)              # (M, 3*WC)

    x_bf = x_ref[...].reshape(M, WC).astype(jnp.bfloat16)

    # ---- branch2a: conv3x3 (*BN scale) as one K-stacked matmul, + bias, + ReLU -------
    t = jnp.dot(conv_operand(x_bf), w2a_ref[...], preferred_element_type=jnp.float32)
    t = jnp.maximum(t + b2a_ref[...], 0.0)

    # ---- branch2b: conv3x3 (*BN scale) + bias (no activation) ------------------------
    y = jnp.dot(conv_operand(t.astype(jnp.bfloat16)), w2b_ref[...],
                preferred_element_type=jnp.float32)
    y = y + b2b_ref[...]

    # ---- identity shortcut (re-read from VMEM in the epilogue) + final ReLU ----------
    short = x_ref[...].reshape(M, WC)
    o_ref[...] = jnp.maximum(y + short, 0.0).reshape(NB, H, WC)


def _banded_conv_weights(w_oihw, W, bn_scale):
    """torch (Cout, Cin, 3, 3) -> (3*W*Cin, W*Cout) bf16 banded (Toeplitz) weights.

    big[(kh*W + wi)*Cin + ci, wo*Cout + co] = scale[co] * w[co, ci, kh, wi - wo + 1]
    when (wi - wo + 1) in {0,1,2}, else 0.  Encodes the kw-sum, the W-direction zero
    padding, the kh-tap stacking along K, and the folded BN scale, so each conv is a
    single MXU matmul.  Scale fold happens in f32 before the bf16 cast (exact).
    """
    Cout, Cin = w_oihw.shape[0], w_oihw.shape[1]
    w_t = jnp.transpose(w_oihw, (2, 3, 1, 0)).astype(jnp.float32)    # (kh, kw, Cin, Cout)
    w_t = w_t * bn_scale.astype(jnp.float32)                         # fold BN scale (Cout axis)
    wi = jnp.arange(W)[:, None]
    wo = jnp.arange(W)[None, :]
    kw = wi - wo + 1
    valid = (kw >= 0) & (kw < 3)
    taps = w_t[:, jnp.clip(kw, 0, 2)] * valid[None, :, :, None, None]  # (3, W, W, Cin, Cout)
    big = jnp.transpose(taps, (0, 1, 3, 2, 4)).reshape(3 * W * Cin, W * Cout)
    return big.astype(jnp.bfloat16)


def _fold_bn(bn, eps=1e-5):
    """(gamma, beta, mean, var) -> (scale, bias) per channel, f32."""
    gamma, beta, mean, var = bn
    scale = gamma / jnp.sqrt(var + eps)
    bias = beta - mean * scale
    return scale.astype(jnp.float32), bias.astype(jnp.float32)


def basic_block_pallas(x_nchw, w2a, bn2a, w2b, bn2b):
    """Fused BasicBlock forward (identity-shortcut, stride=1 config).

    x_nchw : (N, C, H, W) float32  (PyTorch layout)
    w2a    : (Cout, Cin, 3, 3)     branch2a conv weight (torch OIHW)
    bn2a   : (gamma, beta, mean, var), each (Cout,)
    w2b    : (Cout, Cout, 3, 3)
    bn2b   : (gamma, beta, mean, var)
    returns (N, C, H, W) float32
    """
    N, Cin, H, W = x_nchw.shape
    Cout = w2a.shape[0]
    assert Cin == Cout, "identity-shortcut BasicBlock config requires ch_in == ch_out"
    # Banded-weight path is only sensible for small W*C (dense O((W*C)^2) weights).
    assert 3 * W * Cin * W * Cout * 2 <= 8 * 1024 * 1024, "banded path gated to small W*C"

    # NCHW -> lane-dense slabs (N, H, W*Cin); no spatial padding in the wrapper.
    x_slab = jnp.transpose(x_nchw, (0, 2, 3, 1)).reshape(N, H, W * Cin).astype(jnp.float32)

    s2a, b2a = _fold_bn(bn2a)
    s2b, b2b = _fold_bn(bn2b)
    w2a_b = _banded_conv_weights(w2a, W, s2a)        # (3*W*Cin,  W*Cout) bf16
    w2b_b = _banded_conv_weights(w2b, W, s2b)        # (3*W*Cout, W*Cout) bf16
    b2a_t = jnp.tile(b2a, W).reshape(1, W * Cout)    # (1, W*Cout) f32
    b2b_t = jnp.tile(b2b, W).reshape(1, W * Cout)

    # Batch NB images per grid step so the matmul M dim (NB*H) approaches the MXU depth
    # (~256 on v6e/v7x; v5e saturates at 128).  Largest divisor of N keeps the wrapper
    # pad-free; for the demo (N=2, H=16) everything fits in a single grid step.
    target_nb = max(1, 256 // H)
    NB = max(d for d in range(1, N + 1) if N % d == 0 and d <= target_nb)

    out_slab = pl.pallas_call(
        _basic_block_kernel,
        out_shape=jax.ShapeDtypeStruct((N, H, W * Cout), jnp.float32),
        grid_spec=pltpu.PrefetchScalarGridSpec(
            num_scalar_prefetch=0,
            grid=(N // NB,),
            in_specs=[
                pl.BlockSpec((NB, H, W * Cin), lambda n: (n, 0, 0)),
                # Constant index_map -> weights/biases DMA'd once, stay VMEM-resident.
                pl.BlockSpec((3 * W * Cin, W * Cout), lambda n: (0, 0)),
                pl.BlockSpec((1, W * Cout), lambda n: (0, 0)),
                pl.BlockSpec((3 * W * Cout, W * Cout), lambda n: (0, 0)),
                pl.BlockSpec((1, W * Cout), lambda n: (0, 0)),
            ],
            out_specs=pl.BlockSpec((NB, H, W * Cout), lambda n: (n, 0, 0)),
        ),
        compiler_params=pltpu.CompilerParams(
            # Few (here: one) big grid steps; a real 2-TC split would need
            # CORE_PARALLEL / core_map rather than plain "parallel".
            dimension_semantics=("arbitrary",),
        ),
    )(x_slab, w2a_b, b2a_t, w2b_b, b2b_t)

    out = out_slab.reshape(N, H, W, Cout)
    return jnp.transpose(out, (0, 3, 1, 2))          # back to NCHW


def _reference(x_nchw, w2a, bn2a, w2b, bn2b):
    """Pure-JAX f32 reference of the same BasicBlock config (eval-mode BN)."""
    eps = 1e-5
    x = jnp.transpose(x_nchw, (0, 2, 3, 1)).astype(jnp.float32)

    def conv_bn(inp, w, bn, relu):
        w_hwio = jnp.transpose(w, (2, 3, 1, 0)).astype(jnp.float32)
        y = lax.conv_general_dilated(inp, w_hwio, window_strides=(1, 1),
                                     padding=((1, 1), (1, 1)),
                                     dimension_numbers=("NHWC", "HWIO", "NHWC"))
        gamma, beta, mean, var = bn
        y = (y - mean) / jnp.sqrt(var + eps) * gamma + beta
        return jnp.maximum(y, 0.0) if relu else y

    t = conv_bn(x, w2a, bn2a, relu=True)
    t = conv_bn(t, w2b, bn2b, relu=False)
    out = jnp.maximum(t + x, 0.0)
    return jnp.transpose(out, (0, 3, 1, 2))


if __name__ == "__main__":
    key = jax.random.PRNGKey(0)
    N, C, H, W = 2, 4, 16, 16
    ks = jax.random.split(key, 11)

    x = jax.random.normal(ks[0], (N, C, H, W), dtype=jnp.float32)

    # BasicBlock(C, C, stride=1, shortcut=True) parameter shapes.
    w2a = 0.1 * jax.random.normal(ks[1], (C, C, 3, 3), dtype=jnp.float32)
    w2b = 0.1 * jax.random.normal(ks[2], (C, C, 3, 3), dtype=jnp.float32)
    bn2a = (1.0 + 0.1 * jax.random.normal(ks[3], (C,), dtype=jnp.float32),           # gamma
            0.1 * jax.random.normal(ks[4], (C,), dtype=jnp.float32),                 # beta
            0.1 * jax.random.normal(ks[5], (C,), dtype=jnp.float32),                 # running_mean
            1.0 + 0.1 * jnp.abs(jax.random.normal(ks[6], (C,), dtype=jnp.float32)))  # running_var
    bn2b = (1.0 + 0.1 * jax.random.normal(ks[7], (C,), dtype=jnp.float32),
            0.1 * jax.random.normal(ks[8], (C,), dtype=jnp.float32),
            0.1 * jax.random.normal(ks[9], (C,), dtype=jnp.float32),
            1.0 + 0.1 * jnp.abs(jax.random.normal(ks[10], (C,), dtype=jnp.float32)))

    out = jax.block_until_ready(basic_block_pallas(x, w2a, bn2a, w2b, bn2b))
    ref = jax.block_until_ready(_reference(x, w2a, bn2a, w2b, bn2b))

    # Tolerance reflects bf16 MXU operands (f32 accumulation) vs. the f32 reference.
    np.testing.assert_allclose(np.asarray(out), np.asarray(ref), rtol=2e-2, atol=2e-2)

    print("KERNEL_OK")
</pallas_src>

<mosaic_0001>
module attributes {stable_mosaic.version = 11 : i64} {
  func.func @_basic_block_kernel(%arg0: i32, %arg1: memref<2x16x64xf32, #tpu.memory_space<vmem>>, %arg2: memref<192x64xbf16, #tpu.memory_space<vmem>>, %arg3: memref<1x64xf32, #tpu.memory_space<vmem>>, %arg4: memref<192x64xbf16, #tpu.memory_space<vmem>>, %arg5: memref<1x64xf32, #tpu.memory_space<vmem>>, %arg6: memref<2x16x64xf32, #tpu.memory_space<vmem>>) attributes {dimension_semantics = [#tpu.dimension_semantics<arbitrary>], iteration_bounds = array<i64: 1>, scalar_prefetch = 0 : i64, scratch_operands = 0 : i64, tpu.core_type = #tpu.core_type<tc>, window_params = [{transform_indices = @transform_0, window_bounds = array<i64: 2, 16, 64>}, {pipeline_mode = #tpu.pipeline_mode<synchronous>, transform_indices = @transform_1, window_bounds = array<i64: 192, 64>}, {pipeline_mode = #tpu.pipeline_mode<synchronous>, transform_indices = @transform_2, window_bounds = array<i64: 1, 64>}, {pipeline_mode = #tpu.pipeline_mode<synchronous>, transform_indices = @transform_3, window_bounds = array<i64: 192, 64>}, {pipeline_mode = #tpu.pipeline_mode<synchronous>, transform_indices = @transform_4, window_bounds = array<i64: 1, 64>}, {transform_indices = @transform_5, window_bounds = array<i64: 2, 16, 64>}]} {
    %0 = tpu.iota {dimensions = array<i32: 0>} : vector<32x1xi32>
    %c16_i32 = arith.constant 16 : i32
    %c0_i32 = arith.constant 0 : i32
    %1 = arith.cmpi eq, %c16_i32, %c0_i32 : i32
    %c1_i32 = arith.constant 1 : i32
    %2 = arith.select %1, %c1_i32, %c16_i32 : i32
    %3 = vector.broadcast %2 : i32 to vector<32x1xi32>
    %4 = arith.remsi %0, %3 : vector<32x1xi32>
    %c0_i32_0 = arith.constant 0 : i32
    %5 = vector.broadcast %c0_i32_0 : i32 to vector<32x1xi32>
    %6 = arith.cmpi ne, %4, %5 : vector<32x1xi32>
    %c0_i32_1 = arith.constant 0 : i32
    %7 = vector.broadcast %c0_i32_1 : i32 to vector<32x1xi32>
    %8 = arith.cmpi slt, %4, %7 : vector<32x1xi32>
    %c0_i32_2 = arith.constant 0 : i32
    %9 = arith.cmpi slt, %2, %c0_i32_2 : i32
    %10 = vector.broadcast %9 : i1 to vector<32x1xi1>
    %11 = vector.broadcast %10 : vector<32x1xi1> to vector<32x1xi1>
    %12 = arith.xori %8, %11 : vector<32x1xi1>
    %13 = arith.andi %12, %6 : vector<32x1xi1>
    %14 = vector.broadcast %2 : i32 to vector<32x1xi32>
    %15 = arith.addi %4, %14 : vector<32x1xi32>
    %16 = arith.select %13, %15, %4 : vector<32x1xi1>, vector<32x1xi32>
    %c0_i32_3 = arith.constant 0 : i32
    %17 = vector.broadcast %c0_i32_3 : i32 to vector<32x1xi32>
    %18 = arith.cmpi eq, %16, %17 : vector<32x1xi32>
    %c16_i32_4 = arith.constant 16 : i32
    %c0_i32_5 = arith.constant 0 : i32
    %19 = arith.cmpi eq, %c16_i32_4, %c0_i32_5 : i32
    %c1_i32_6 = arith.constant 1 : i32
    %20 = arith.select %19, %c1_i32_6, %c16_i32_4 : i32
    %21 = vector.broadcast %20 : i32 to vector<32x1xi32>
    %22 = arith.remsi %0, %21 : vector<32x1xi32>
    %c0_i32_7 = arith.constant 0 : i32
    %23 = vector.broadcast %c0_i32_7 : i32 to vector<32x1xi32>
    %24 = arith.cmpi ne, %22, %23 : vector<32x1xi32>
    %c0_i32_8 = arith.constant 0 : i32
    %25 = vector.broadcast %c0_i32_8 : i32 to vector<32x1xi32>
    %26 = arith.cmpi slt, %22, %25 : vector<32x1xi32>
    %c0_i32_9 = arith.constant 0 : i32
    %27 = arith.cmpi slt, %20, %c0_i32_9 : i32
    %28 = vector.broadcast %27 : i1 to vector<32x1xi1>
    %29 = vector.broadcast %28 : vector<32x1xi1> to vector<32x1xi1>
    %30 = arith.xori %26, %29 : vector<32x1xi1>
    %31 = arith.andi %30, %24 : vector<32x1xi1>
    %32 = vector.broadcast %20 : i32 to vector<32x1xi32>
    %33 = arith.addi %22, %32 : vector<32x1xi32>
    %34 = arith.select %31, %33, %22 : vector<32x1xi1>, vector<32x1xi32>
    %c15_i32 = arith.constant 15 : i32
    %35 = vector.broadcast %c15_i32 : i32 to vector<32x1xi32>
    %36 = arith.cmpi eq, %34, %35 : vector<32x1xi32>
    %c0 = arith.constant 0 : index
    %c0_10 = arith.constant 0 : index
    %c0_11 = arith.constant 0 : index
    %37 = vector.load %arg1[%c0, %c0_10, %c0_11] : memref<2x16x64xf32, #tpu.memory_space<vmem>>, vector<2x16x64xf32>
    %38 = vector.shape_cast %37 : vector<2x16x64xf32> to vector<32x64xf32>
    %39 = arith.truncf %38 : vector<32x64xf32> to vector<32x64xbf16>
    %cst = arith.constant 0.000000e+00 : bf16
    %40 = vector.broadcast %cst : bf16 to vector<1x64xbf16>
    %41 = tpu.concatenate %40, %39, %40 in 0 : vector<1x64xbf16>, vector<32x64xbf16>, vector<1x64xbf16> -> vector<34x64xbf16>
    %cst_12 = arith.constant 0.000000e+00 : bf16
    %42 = vector.broadcast %cst_12 : bf16 to vector<32x64xbf16>
    %43 = vector.extract_strided_slice %41 {offsets = [0, 0], sizes = [32, 64], strides = [1, 1]} : vector<34x64xbf16> to vector<32x64xbf16>
    %44 = vector.shape_cast %18 : vector<32x1xi1> to vector<32x1xi1>
    %45 = vector.broadcast %44 : vector<32x1xi1> to vector<32x64xi1>
    %46 = arith.select %45, %42, %43 : vector<32x64xi1>, vector<32x64xbf16>
    %cst_13 = arith.constant 0.000000e+00 : bf16
    %47 = vector.broadcast %cst_13 : bf16 to vector<32x64xbf16>
    %48 = vector.extract_strided_slice %41 {offsets = [2, 0], sizes = [32, 64], strides = [1, 1]} : vector<34x64xbf16> to vector<32x64xbf16>
    %49 = vector.shape_cast %36 : vector<32x1xi1> to vector<32x1xi1>
    %50 = vector.broadcast %49 : vector<32x1xi1> to vector<32x64xi1>
    %51 = arith.select %50, %47, %48 : vector<32x64xi1>, vector<32x64xbf16>
    %52 = tpu.concatenate %46, %39, %51 in 1 : vector<32x64xbf16>, vector<32x64xbf16>, vector<32x64xbf16> -> vector<32x192xbf16>
    %c0_14 = arith.constant 0 : index
    %c0_15 = arith.constant 0 : index
    %53 = vector.load %arg2[%c0_14, %c0_15] : memref<192x64xbf16, #tpu.memory_space<vmem>>, vector<192x64xbf16>
    %cst_16 = arith.constant dense<0.000000e+00> : vector<32x64xf32>
    %54 = tpu.matmul %52, %53, %cst_16 {dimension_numbers = #tpu.dot_dimension_numbers<[1], [0], [0], [1], [0, 0, 1, 1], [], []>} : vector<32x192xbf16>, vector<192x64xbf16>, vector<32x64xf32> -> vector<32x64xf32>
    %c0_17 = arith.constant 0 : index
    %c0_18 = arith.constant 0 : index
    %55 = vector.load %arg3[%c0_17, %c0_18] : memref<1x64xf32, #tpu.memory_space<vmem>>, vector<1x64xf32>
    %56 = vector.broadcast %55 : vector<1x64xf32> to vector<32x64xf32>
    %57 = arith.addf %54, %56 : vector<32x64xf32>
    %cst_19 = arith.constant 0.000000e+00 : f32
    %58 = vector.broadcast %cst_19 : f32 to vector<32x64xf32>
    %59 = arith.maximumf %57, %58 : vector<32x64xf32>
    %60 = arith.truncf %59 : vector<32x64xf32> to vector<32x64xbf16>
    %cst_20 = arith.constant 0.000000e+00 : bf16
    %61 = vector.broadcast %cst_20 : bf16 to vector<1x64xbf16>
    %62 = tpu.concatenate %61, %60, %61 in 0 : vector<1x64xbf16>, vector<32x64xbf16>, vector<1x64xbf16> -> vector<34x64xbf16>
    %cst_21 = arith.constant 0.000000e+00 : bf16
    %63 = vector.broadcast %cst_21 : bf16 to vector<32x64xbf16>
    %64 = vector.extract_strided_slice %62 {offsets = [0, 0], sizes = [32, 64], strides = [1, 1]} : vector<34x64xbf16> to vector<32x64xbf16>
    %65 = vector.shape_cast %18 : vector<32x1xi1> to vector<32x1xi1>
    %66 = vector.broadcast %65 : vector<32x1xi1> to vector<32x64xi1>
    %67 = arith.select %66, %63, %64 : vector<32x64xi1>, vector<32x64xbf16>
    %cst_22 = arith.constant 0.000000e+00 : bf16
    %68 = vector.broadcast %cst_22 : bf16 to vector<32x64xbf16>
    %69 = vector.extract_strided_slice %62 {offsets = [2, 0], sizes = [32, 64], strides = [1, 1]} : vector<34x64xbf16> to vector<32x64xbf16>
    %70 = vector.shape_cast %36 : vector<32x1xi1> to vector<32x1xi1>
    %71 = vector.broadcast %70 : vector<32x1xi1> to vector<32x64xi1>
    %72 = arith.select %71, %68, %69 : vector<32x64xi1>, vector<32x64xbf16>
    %73 = tpu.concatenate %67, %60, %72 in 1 : vector<32x64xbf16>, vector<32x64xbf16>, vector<32x64xbf16> -> vector<32x192xbf16>
    %c0_23 = arith.constant 0 : index
    %c0_24 = arith.constant 0 : index
    %74 = vector.load %arg4[%c0_23, %c0_24] : memref<192x64xbf16, #tpu.memory_space<vmem>>, vector<192x64xbf16>
    %cst_25 = arith.constant dense<0.000000e+00> : vector<32x64xf32>
    %75 = tpu.matmul %73, %74, %cst_25 {dimension_numbers = #tpu.dot_dimension_numbers<[1], [0], [0], [1], [0, 0, 1, 1], [], []>} : vector<32x192xbf16>, vector<192x64xbf16>, vector<32x64xf32> -> vector<32x64xf32>
    %c0_26 = arith.constant 0 : index
    %c0_27 = arith.constant 0 : index
    %76 = vector.load %arg5[%c0_26, %c0_27] : memref<1x64xf32, #tpu.memory_space<vmem>>, vector<1x64xf32>
    %77 = vector.broadcast %76 : vector<1x64xf32> to vector<32x64xf32>
    %78 = arith.addf %75, %77 : vector<32x64xf32>
    %c0_28 = arith.constant 0 : index
    %c0_29 = arith.constant 0 : index
    %c0_30 = arith.constant 0 : index
    %79 = vector.load %arg1[%c0_28, %c0_29, %c0_30] : memref<2x16x64xf32, #tpu.memory_space<vmem>>, vector<2x16x64xf32>
    %80 = vector.shape_cast %79 : vector<2x16x64xf32> to vector<32x64xf32>
    %81 = arith.addf %78, %80 : vector<32x64xf32>
    %cst_31 = arith.constant 0.000000e+00 : f32
    %82 = vector.broadcast %cst_31 : f32 to vector<32x64xf32>
    %83 = arith.maximumf %81, %82 : vector<32x64xf32>
    %84 = vector.shape_cast %83 : vector<32x64xf32> to vector<2x16x64xf32>
    %c0_32 = arith.constant 0 : index
    %c0_33 = arith.constant 0 : index
    %c0_34 = arith.constant 0 : index
    %85 = vector.load %arg6[%c0_32, %c0_33, %c0_34] : memref<2x16x64xf32, #tpu.memory_space<vmem>>, vector<2x16x64xf32>
    tpu.vector_store %arg6[%c0_32, %c0_33, %c0_34], %84 {strides = array<i32>} : memref<2x16x64xf32, #tpu.memory_space<vmem>>, vector<2x16x64xf32>,
    return
  }
  func.func @transform_0(%arg0: i32) -> (i32, i32, i32) {
    %c0_i32 = arith.constant 0 : i32
    %c0_i32_0 = arith.constant 0 : i32
    %c0_i32_1 = arith.constant 0 : i32
    return %arg0, %c0_i32, %c0_i32_0 : i32, i32, i32
  }
  func.func @transform_1(%arg0: i32) -> (i32, i32) {
    %c0_i32 = arith.constant 0 : i32
    %c0_i32_0 = arith.constant 0 : i32
    %c0_i32_1 = arith.constant 0 : i32
    return %c0_i32, %c0_i32_0 : i32, i32
  }
  func.func @transform_2(%arg0: i32) -> (i32, i32) {
    %c0_i32 = arith.constant 0 : i32
    %c0_i32_0 = arith.constant 0 : i32
    %c0_i32_1 = arith.constant 0 : i32
    return %c0_i32, %c0_i32_0 : i32, i32
  }
  func.func @transform_3(%arg0: i32) -> (i32, i32) {
    %c0_i32 = arith.constant 0 : i32
    %c0_i32_0 = arith.constant 0 : i32
    %c0_i32_1 = arith.constant 0 : i32
    return %c0_i32, %c0_i32_0 : i32, i32
  }
  func.func @transform_4(%arg0: i32) -> (i32, i32) {
    %c0_i32 = arith.constant 0 : i32
    %c0_i32_0 = arith.constant 0 : i32
    %c0_i32_1 = arith.constant 0 : i32
    return %c0_i32, %c0_i32_0 : i32, i32
  }
  func.func @transform_5(%arg0: i32) -> (i32, i32, i32) {
    %c0_i32 = arith.constant 0 : i32
    %c0_i32_0 = arith.constant 0 : i32
    %c0_i32_1 = arith.constant 0 : i32
    return %arg0, %c0_i32, %c0_i32_0 : i32, i32, i32
  }
}

</mosaic_0001>

<llo_original>
// kernel: tpu_custom_call.1
$region0: #{tpu_custom_call.1}
  #allocation0 [shape = 'u32[]', space=smem, size = 0x4, offset = 0x4, fixed_abs, tag = 'smem constant byte address 0x4 - core index']
  #allocation1 [shape = 'u32[144,128]{1,0:T(1,128)}', space=vmem, size = 0x12000, scoped, tag = 'internal scratch']
  %s0 = inlined_call_operand.vmem [shape: f32[2,16,64], index: 0, kind: input, shape index: {}]
  %s1 = inlined_call_operand.vmem [shape: bf16[192,64], index: 1, kind: input, shape index: {}]
  %s2 = inlined_call_operand.vmem [shape: f32[1,64], index: 2, kind: input, shape index: {}]
  %s3 = inlined_call_operand.vmem [shape: bf16[192,64], index: 3, kind: input, shape index: {}]
  %s4 = inlined_call_operand.vmem [shape: f32[1,64], index: 4, kind: input, shape index: {}]
  %s5 = inlined_call_operand.hbm [shape: f32[2,16,64], index: 5, kind: output, shape index: {}]
  %s6 = sld [smem:[#allocation0]]
  $region30: #{tpu_custom_call.1} parent=0
    _
  %s8 = ssub.s32 1, %s6
  %s9 = scalar_select 0, %s8, %s6
  $region1: #{tpu_custom_call.1} parent=0
    #allocation2 [shape = 'u8[16384]{0}', space=vmem, size = 0x4000, scoped, tag = 'output window, operand 0, single buffered']
    #allocation3 [shape = 's32[1]{0}', space=sflag, size = 0x4, scoped, tag = 'scoped memory for tpu_custom_call.1']
    %10 = vsyncpa [#allocation3], 0
    // Predicated region
    $region2: #{tpu_custom_call.1} parent=1 // pred_check
      _
    $region3: #{tpu_custom_call.1} parent=1 // pred_check_branch
      %12 = sbr.rel (0) target = $region5
    $region4: #{tpu_custom_call.1} parent=1 // pred_region
      _
    $region5: #{tpu_custom_call.1} parent=1 // pred_fallthru
      _
    // Predicated region
    $region6: #{tpu_custom_call.1} parent=1 // pred_check
      _
    $region7: #{tpu_custom_call.1} parent=1 // pred_check_branch
      %14 = sbr.rel (0) target = $region9
    $region8: #{tpu_custom_call.1} parent=1 // pred_region
      _
    $region9: #{tpu_custom_call.1} parent=1 // pred_fallthru
      _
    // Predicated region
    $region10: #{tpu_custom_call.1} parent=1 // pred_check
      _
    $region11: #{tpu_custom_call.1} parent=1 // pred_check_branch
      %16 = sbr.rel (0) target = $region13
    $region12: #{tpu_custom_call.1} parent=1 // pred_region
      _
    $region13: #{tpu_custom_call.1} parent=1 // pred_fallthru
      _
    // Predicated region
    $region14: #{tpu_custom_call.1} parent=1 // pred_check
      _
    $region15: #{tpu_custom_call.1} parent=1 // pred_check_branch
      %18 = sbr.rel (0) target = $region17
    $region16: #{tpu_custom_call.1} parent=1 // pred_region
      _
    $region17: #{tpu_custom_call.1} parent=1 // pred_fallthru
      _
    // Predicated region
    $region18: #{tpu_custom_call.1} parent=1 // pred_check
      _
    $region19: #{tpu_custom_call.1} parent=1 // pred_check_branch
      %20 = sbr.rel (0) target = $region21
    $region20: #{tpu_custom_call.1} parent=1 // pred_region
      _
    $region21: #{tpu_custom_call.1} parent=1 // pred_fallthru
      _
    %v24 = vlaneseq
    %v25 = vshrl.u32 %v24, 7
    %v26 = vadd.s32 %v25, 8
    %v27 = vadd.s32 %v25, 16
    %v28 = vadd.s32 %v25, 24
    %vm29 = vcmp.lt.s32.totalorder %v25, 0
    %v30 = vsub.s32 0, %v25
    %v31 = vsel %vm29, %v30, %v25
    %v32 = vshrl.u32 %v31, 4
    %v33 = vand.u32 %v31, 15
    %v34 = vsub.s32 0, %v33
    %v35 = vsel %vm29, %v34, %v33
    %vm36 = vcmp.lt.s32.totalorder %v26, 0
    %v37 = vsub.s32 0, %v26
    %v38 = vsel %vm36, %v37, %v26
    %v39 = vshrl.u32 %v38, 4
    %v40 = vand.u32 %v38, 15
    %v41 = vsub.s32 0, %v40
    %v42 = vsel %vm36, %v41, %v40
    %vm43 = vcmp.lt.s32.totalorder %v27, 0
    %v44 = vsub.s32 0, %v27
    %v45 = vsel %vm43, %v44, %v27
    %v46 = vshrl.u32 %v45, 4
    %v47 = vand.u32 %v45, 15
    %v48 = vsub.s32 0, %v47
    %v49 = vsel %vm43, %v48, %v47
    %vm50 = vcmp.lt.s32.totalorder %v28, 0
    %v51 = vsub.s32 0, %v28
    %v52 = vsel %vm50, %v51, %v28
    %v53 = vshrl.u32 %v52, 4
    %v54 = vand.u32 %v52, 15
    %v55 = vsub.s32 0, %v54
    %v56 = vsel %vm50, %v55, %v54
    %vm57 = vcmp.ne.s32.totalorder %v35, 0
    %vm58 = vcmp.ne.s32.totalorder %v42, 0
    %vm59 = vcmp.ne.s32.totalorder %v49, 0
    %vm60 = vcmp.ne.s32.totalorder %v56, 0
    %vm61 = vcmp.lt.s32.totalorder %v35, 0
    %vm62 = vcmp.lt.s32.totalorder %v42, 0
    %vm63 = vcmp.lt.s32.totalorder %v49, 0
    %vm64 = vcmp.lt.s32.totalorder %v56, 0
    %vm65 = vmand %vm61, %vm57
    %vm66 = vmand %vm62, %vm58
    %vm67 = vmand %vm63, %vm59
    %vm68 = vmand %vm64, %vm60
    %v69 = vadd.s32 %v35, 16
    %v70 = vadd.s32 %v42, 16
    %v71 = vadd.s32 %v49, 16
    %v72 = vadd.s32 %v56, 16
    %v73 = vsel %vm65, %v69, %v35
    %v74 = vsel %vm66, %v70, %v42
    %v75 = vsel %vm67, %v71, %v49
    %v76 = vsel %vm68, %v72, %v56
    %vm77 = vcmp.eq.s32.totalorder %v73, 0
    %vm78 = vcmp.eq.s32.totalorder %v74, 0
    %vm79 = vcmp.eq.s32.totalorder %v75, 0
    %vm80 = vcmp.eq.s32.totalorder %v76, 0
    %vm81 = vcmp.eq.s32.totalorder %v73, 15
    %vm82 = vcmp.eq.s32.totalorder %v74, 15
    %vm83 = vcmp.eq.s32.totalorder %v75, 15
    %vm84 = vcmp.eq.s32.totalorder %v76, 15
    %v85 = vld [vmem:[%s0] sm:$0xff]
    %v86 = vld [vmem:[%s0 + $0x8] sm:$0xff]
    %v87 = vld [vmem:[%s0 + $0x10] sm:$0xff]
    %v88 = vld [vmem:[%s0 + $0x18] sm:$0xff]
    %v89 = vpack.c.bf16 %v86, %v85
    %v90 = vpack.c.bf16 %v88, %v87
    %vm91 = vsmask.f32 256
    %v93 = vshrl.u32 %v89, 16
    %v95 = vrot.slane %v93, 7
    %v96 = vshll.u32 %v89, 16
    %v98 = vor.u32 %v95, %v96
    %v100 = vshrl.u32 %v90, 16
    %v102 = vrot.slane %v100, 7
    %v103 = vshll.u32 %v90, 16
    %v105 = vor.u32 %v102, %v103
    %v106 = vsel %vm91, %v95, %v105
    %vm110 = vcmask 1040384
    %vm111 = vmand %vm110, %vm91
    %v112 = vsel %vm111, 0, %v98
    %v113 = vsel %vm111, %v102, 0
    %v114 = vsel %vm77, 1, 0
    %v115 = vsel %vm78, 1, 0
    %v116 = vsel %vm79, 1, 0
    %v117 = vsel %vm80, 1, 0
    %vm118 = vcmp.eq.s32.totalorder %v114, 1
    %vm119 = vcmp.eq.s32.totalorder %v115, 1
    %vm120 = vcmp.eq.s32.totalorder %v116, 1
    %vm121 = vcmp.eq.s32.totalorder %v117, 1
    %vm122 = vmpackc.low %vm118, %vm118
    %vm123 = vmpackc.low %vm119, %vm119
    %vm124 = vmpackc.low %vm120, %vm120
    %vm125 = vmpackc.low %vm121, %vm121
    %v126 = vsel %vm122, 65537, 0
    %v127 = vsel %vm123, 65537, 0
    %v128 = vsel %vm124, 65537, 0
    %v129 = vsel %vm125, 65537, 0
    %v130 = vunpack.c.l.b16 %v126
    %v131 = vunpack.c.l.b16 %v127
    %v132 = vunpack.c.l.b16 %v128
    %v133 = vunpack.c.l.b16 %v129
    %v134 = vpack.c.b16 %v131, %v130
    %v135 = vpack.c.b16 %v133, %v132
    %vm136 = vcmp.ne.s16.totalorder %v134, 0
    %vm137 = vcmp.ne.s16.totalorder %v135, 0
    %v138 = vsel %vm136, 0, %v112
    %v139 = vsel %vm137, 0, %v106
    %v140 = vsel %vm81, 1, 0
    %v141 = vsel %vm82, 1, 0
    %v142 = vsel %vm83, 1, 0
    %v143 = vsel %vm84, 1, 0
    %vm144 = vcmp.eq.s32.totalorder %v140, 1
    %vm145 = vcmp.eq.s32.totalorder %v141, 1
    %vm146 = vcmp.eq.s32.totalorder %v142, 1
    %vm147 = vcmp.eq.s32.totalorder %v143, 1
    %vm148 = vmpackc.low %vm144, %vm144
    %vm149 = vmpackc.low %vm145, %vm145
    %vm150 = vmpackc.low %vm146, %vm146
    %vm151 = vmpackc.low %vm147, %vm147
    %v152 = vsel %vm148, 65537, 0
    %v153 = vsel %vm149, 65537, 0
    %v154 = vsel %vm150, 65537, 0
    %v155 = vsel %vm151, 65537, 0
    %v156 = vunpack.c.l.b16 %v152
    %v157 = vunpack.c.l.b16 %v153
    %v158 = vunpack.c.l.b16 %v154
    %v159 = vunpack.c.l.b16 %v155
    %v160 = vpack.c.b16 %v157, %v156
    %v161 = vpack.c.b16 %v159, %v158
    %v162 = vrot.slane %v160, 7
    %v163 = vrot.slane %v161, 7
    %v164 = vsel %vm110, %v162, %v163
    %vm165 = vcmp.ne.s16.totalorder %v162, 0
    %vm166 = vcmp.ne.s16.totalorder %v164, 0
    %vm167 = vcmp.ne.s16.totalorder %v163, 0
    %v168 = vsel %vm165, 0, %v112
    %v169 = vsel %vm166, 0, %v106
    %v170 = vsel %vm167, 0, %v113
    %173 = vrot.lane.b32.xlu0 %v89, 64
    %v174 = vpop.permute.xlu0 %173
    %175 = vrot.lane.b32.xlu0 %v90, 64
    %v176 = vpop.permute.xlu0 %175
    %vm180 = vcmask 1046528
    %v181 = vrot.slane %v168, 1
    %v182 = vrot.slane %v169, 1
    %v183 = vsel %vm180, %v181, %v182
    %v184 = vrot.slane %v170, 1
    %v185 = vsel %vm180, %v182, %v184
    %vm186 = vcmask 523264
    %v189 = vsel %vm186, %v138, %v174
    %v193 = vsel %vm186, %v139, %v176
    %v195 = vld [vmem:[%s1] sm:$0xf]
    %v196 = vld [vmem:[%s1 + $0x4] sm:$0xf]
    %v197 = vld [vmem:[%s1 + $0x8] sm:$0xf]
    %v198 = vld [vmem:[%s1 + $0xc] sm:$0xf]
    %v199 = vld [vmem:[%s1 + $0x10] sm:$0xf]
    %v200 = vld [vmem:[%s1 + $0x14] sm:$0xf]
    %v201 = vld [vmem:[%s1 + $0x18] sm:$0xf]
    %v202 = vld [vmem:[%s1 + $0x1c] sm:$0xf]
    %v203 = vld [vmem:[%s1 + $0x20] sm:$0xf]
    %v204 = vld [vmem:[%s1 + $0x24] sm:$0xf]
    %v205 = vld [vmem:[%s1 + $0x28] sm:$0xf]
    %v206 = vld [vmem:[%s1 + $0x2c] sm:$0xf]
    %v207 = vld [vmem:[%s1 + $0x30] sm:$0xf]
    %v208 = vld [vmem:[%s1 + $0x34] sm:$0xf]
    %v209 = vld [vmem:[%s1 + $0x38] sm:$0xf]
    %v210 = vld [vmem:[%s1 + $0x3c] sm:$0xf]
    %v211 = vld [vmem:[%s1 + $0x40] sm:$0xf]
    %v212 = vld [vmem:[%s1 + $0x44] sm:$0xf]
    %v213 = vld [vmem:[%s1 + $0x48] sm:$0xf]
    %v214 = vld [vmem:[%s1 + $0x4c] sm:$0xf]
    %v215 = vld [vmem:[%s1 + $0x50] sm:$0xf]
    %v216 = vld [vmem:[%s1 + $0x54] sm:$0xf]
    %v217 = vld [vmem:[%s1 + $0x58] sm:$0xf]
    %v218 = vld [vmem:[%s1 + $0x5c] sm:$0xf]
    %v219 = vld [vmem:[%s2] sm:$0x1]
    %v221 = vlaneseq
    %v222 = vshrl.u32 %v221, 7
    %v223 = vsub.s32 0, %v222
    %v224 = vrot.slane %v219, %v223
    %v250 = vunpack.c.l.b16 %v195
    %v251 = vunpack.c.l.b16 %v196
    %v252 = vunpack.c.l.b16 %v197
    %v253 = vunpack.c.l.b16 %v198
    %v254 = vunpack.c.l.b16 %v199
    %v255 = vunpack.c.l.b16 %v200
    %v256 = vunpack.c.l.b16 %v201
    %v257 = vunpack.c.l.b16 %v202
    %v258 = vunpack.c.l.b16 %v203
    %v259 = vunpack.c.l.b16 %v204
    %v260 = vunpack.c.l.b16 %v205
    %v261 = vunpack.c.l.b16 %v206
    %v262 = vunpack.c.l.b16 %v207
    %v263 = vunpack.c.l.b16 %v208
    %v264 = vunpack.c.l.b16 %v209
    %v265 = vunpack.c.l.b16 %v210
    %v266 = vunpack.c.l.b16 %v211
    %v267 = vunpack.c.l.b16 %v212
    %v268 = vunpack.c.l.b16 %v213
    %v269 = vunpack.c.l.b16 %v214
    %v270 = vunpack.c.l.b16 %v215
    %v271 = vunpack.c.l.b16 %v216
    %v272 = vunpack.c.l.b16 %v217
    %v273 = vunpack.c.l.b16 %v218
    %v274 = vpack.c.b16 %v251, %v250
    %v275 = vpack.c.b16 %v253, %v252
    %v276 = vpack.c.b16 %v255, %v254
    %v277 = vpack.c.b16 %v257, %v256
    %v278 = vpack.c.b16 %v259, %v258
    %v279 = vpack.c.b16 %v261, %v260
    %v280 = vpack.c.b16 %v263, %v262
    %v281 = vpack.c.b16 %v265, %v264
    %v282 = vpack.c.b16 %v267, %v266
    %v283 = vpack.c.b16 %v269, %v268
    %v284 = vpack.c.b16 %v271, %v270
    %v285 = vpack.c.b16 %v273, %v272
    %v299 = vsel %vm186, %v183, 0
    %v302 = vsel %vm186, %v185, 0
    %304 = vmatprep.subr.bf16.mxu0 0
    %305 = vmatpush1.bf16.msra.mxu0 %v274
    %306 = vmatprep.subr.bf16.mxu0 0
    %307 = vmatpush1.bf16.msra.mxu0 %v275
    %308 = vmatprep.subr.bf16.mxu0 0
    %309 = vmatpush1.bf16.msra.mxu0 %v276
    %310 = vmatprep.subr.bf16.mxu0 0
    %311 = vmatpush1.bf16.msra.mxu0 %v277
    %312 = vmatprep.subr.bf16.mxu0 0
    %313 = vmatpush1.bf16.msra.mxu0 %v278
    %314 = vmatprep.subr.bf16.mxu0 0
    %315 = vmatpush1.bf16.msra.mxu0 %v279
    %316 = vmatprep.subr.bf16.mxu0 0
    %317 = vmatpush1.bf16.msra.mxu0 %v280
    %318 = vmatprep.subr.bf16.mxu0 0
    %319 = vmatpush1.bf16.msra.mxu0 %v281
    %320 = vmatprep.subr.bf16.mxu0 0
    %321 = vmatpush1.bf16.msra.mxu0 %v282
    %322 = vmatprep.subr.bf16.mxu0 0
    %323 = vmatpush1.bf16.msra.mxu0 %v283
    %324 = vmatprep.subr.bf16.mxu0 0
    %325 = vmatpush1.bf16.msra.mxu0 %v284
    %326 = vmatprep.subr.bf16.mxu0 0
    %327 = vmatpush1.bf16.msra.mxu0 %v285
    %328 = vmatprep.subr.bf16.mxu0 0
    %329 = vmatpush1.bf16.msra.mxu0 0
    %330 = vmatprep.subr.bf16.mxu0 0
    %331 = vmatpush1.bf16.msra.mxu0 0
    %332 = vmatprep.subr.bf16.mxu0 0
    %333 = vmatpush1.bf16.msra.mxu0 0
    %334 = vmatprep.subr.bf16.mxu0 0
    %335 = vmatpush1.bf16.msra.mxu0 0
    %336 = vmatprep.mubr.bf16.mxu0 %v299
    %337 = vmatmul.mubr.bf16.gmra.mrb[0].mxu0 %v189
    %v338 = vpop.f32.mrb[0].mxu0
    %v339 = vadd.f32 %v224, %v338
    %v340 = vpop.f32.mrb[0].mxu0
    %v341 = vpop.f32.mrb[0].mxu0
    %v342 = vadd.f32 %v224, %v341
    %v343 = vpop.f32.mrb[0].mxu0
    %344 = vmatprep.mubr.bf16.mxu0 %v302
    %345 = vmatmul.mubr.bf16.gmra.mrb[0].mxu0 %v193
    %v346 = vpop.f32.mrb[0].mxu0
    %v347 = vadd.f32 %v224, %v346
    %v348 = vpop.f32.mrb[0].mxu0
    %v349 = vpop.f32.mrb[0].mxu0
    %v350 = vadd.f32 %v224, %v349
    %v351 = vpop.f32.mrb[0].mxu0
    %352 = vdwg.mxu0
    %v353 = vmax.f32 %v339, 0.0
    %v354 = vmax.f32 %v342, 0.0
    %v355 = vmax.f32 %v347, 0.0
    %v356 = vmax.f32 %v350, 0.0
    %v357 = vpack.c.bf16 %v354, %v353
    %v358 = vpack.c.bf16 %v356, %v355
    %v360 = vshrl.u32 %v357, 16
    %v362 = vrot.slane %v360, 7
    %v363 = vshll.u32 %v357, 16
    %v365 = vor.u32 %v362, %v363
    %v367 = vshrl.u32 %v358, 16
    %v369 = vrot.slane %v367, 7
    %v370 = vshll.u32 %v358, 16
    %v372 = vor.u32 %v369, %v370
    %v373 = vsel %vm91, %v362, %v372
    %v377 = vsel %vm111, 0, %v365
    %v378 = vsel %vm111, %v369, 0
    %v379 = vsel %vm136, 0, %v377
    %v380 = vsel %vm137, 0, %v373
    %v381 = vsel %vm165, 0, %v377
    %v382 = vsel %vm166, 0, %v373
    %v383 = vsel %vm167, 0, %v378
    %386 = vrot.lane.b32.xlu0 %v357, 64
    %v387 = vpop.permute.xlu0 %386
    %388 = vrot.lane.b32.xlu0 %v358, 64
    %v389 = vpop.permute.xlu0 %388
    %v393 = vrot.slane %v381, 1
    %v394 = vrot.slane %v382, 1
    %v395 = vsel %vm180, %v393, %v394
    %v396 = vrot.slane %v383, 1
    %v397 = vsel %vm180, %v394, %v396
    %v400 = vsel %vm186, %v379, %v387
    %v404 = vsel %vm186, %v380, %v389
    %v406 = vld [vmem:[%s3] sm:$0xf]
    %v407 = vld [vmem:[%s3 + $0x4] sm:$0xf]
    %v408 = vld [vmem:[%s3 + $0x8] sm:$0xf]
    %v409 = vld [vmem:[%s3 + $0xc] sm:$0xf]
    %v410 = vld [vmem:[%s3 + $0x10] sm:$0xf]
    %v411 = vld [vmem:[%s3 + $0x14] sm:$0xf]
    %v412 = vld [vmem:[%s3 + $0x18] sm:$0xf]
    %v413 = vld [vmem:[%s3 + $0x1c] sm:$0xf]
    %v414 = vld [vmem:[%s3 + $0x20] sm:$0xf]
    %v415 = vld [vmem:[%s3 + $0x24] sm:$0xf]
    %v416 = vld [vmem:[%s3 + $0x28] sm:$0xf]
    %v417 = vld [vmem:[%s3 + $0x2c] sm:$0xf]
    %v418 = vld [vmem:[%s3 + $0x30] sm:$0xf]
    %v419 = vld [vmem:[%s3 + $0x34] sm:$0xf]
    %v420 = vld [vmem:[%s3 + $0x38] sm:$0xf]
    %v421 = vld [vmem:[%s3 + $0x3c] sm:$0xf]
    %v422 = vld [vmem:[%s3 + $0x40] sm:$0xf]
    %v423 = vld [vmem:[%s3 + $0x44] sm:$0xf]
    %v424 = vld [vmem:[%s3 + $0x48] sm:$0xf]
    %v425 = vld [vmem:[%s3 + $0x4c] sm:$0xf]
    %v426 = vld [vmem:[%s3 + $0x50] sm:$0xf]
    %v427 = vld [vmem:[%s3 + $0x54] sm:$0xf]
    %v428 = vld [vmem:[%s3 + $0x58] sm:$0xf]
    %v429 = vld [vmem:[%s3 + $0x5c] sm:$0xf]
    %v430 = vld [vmem:[%s4] sm:$0x1]
    %v432 = vlaneseq
    %v433 = vshrl.u32 %v432, 7
    %v434 = vsub.s32 0, %v433
    %v435 = vrot.slane %v430, %v434
    %v461 = vunpack.c.l.b16 %v406
    %v462 = vunpack.c.l.b16 %v407
    %v463 = vunpack.c.l.b16 %v408
    %v464 = vunpack.c.l.b16 %v409
    %v465 = vunpack.c.l.b16 %v410
    %v466 = vunpack.c.l.b16 %v411
    %v467 = vunpack.c.l.b16 %v412
    %v468 = vunpack.c.l.b16 %v413
    %v469 = vunpack.c.l.b16 %v414
    %v470 = vunpack.c.l.b16 %v415
    %v471 = vunpack.c.l.b16 %v416
    %v472 = vunpack.c.l.b16 %v417
    %v473 = vunpack.c.l.b16 %v418
    %v474 = vunpack.c.l.b16 %v419
    %v475 = vunpack.c.l.b16 %v420
    %v476 = vunpack.c.l.b16 %v421
    %v477 = vunpack.c.l.b16 %v422
    %v478 = vunpack.c.l.b16 %v423
    %v479 = vunpack.c.l.b16 %v424
    %v480 = vunpack.c.l.b16 %v425
    %v481 = vunpack.c.l.b16 %v426
    %v482 = vunpack.c.l.b16 %v427
    %v483 = vunpack.c.l.b16 %v428
    %v484 = vunpack.c.l.b16 %v429
    %v485 = vpack.c.b16 %v462, %v461
    %v486 = vpack.c.b16 %v464, %v463
    %v487 = vpack.c.b16 %v466, %v465
    %v488 = vpack.c.b16 %v468, %v467
    %v489 = vpack.c.b16 %v470, %v469
    %v490 = vpack.c.b16 %v472, %v471
    %v491 = vpack.c.b16 %v474, %v473
    %v492 = vpack.c.b16 %v476, %v475
    %v493 = vpack.c.b16 %v478, %v477
    %v494 = vpack.c.b16 %v480, %v479
    %v495 = vpack.c.b16 %v482, %v481
    %v496 = vpack.c.b16 %v484, %v483
    %v510 = vsel %vm186, %v395, 0
    %v513 = vsel %vm186, %v397, 0
    %515 = vmatprep.subr.bf16.mxu0 0
    %516 = vmatpush1.bf16.msra.mxu0 %v485
    %517 = vmatprep.subr.bf16.mxu0 0
    %518 = vmatpush1.bf16.msra.mxu0 %v486
    %519 = vmatprep.subr.bf16.mxu0 0
    %520 = vmatpush1.bf16.msra.mxu0 %v487
    %521 = vmatprep.subr.bf16.mxu0 0
    %522 = vmatpush1.bf16.msra.mxu0 %v488
    %523 = vmatprep.subr.bf16.mxu0 0
    %524 = vmatpush1.bf16.msra.mxu0 %v489
    %525 = vmatprep.subr.bf16.mxu0 0
    %526 = vmatpush1.bf16.msra.mxu0 %v490
    %527 = vmatprep.subr.bf16.mxu0 0
    %528 = vmatpush1.bf16.msra.mxu0 %v491
    %529 = vmatprep.subr.bf16.mxu0 0
    %530 = vmatpush1.bf16.msra.mxu0 %v492
    %531 = vmatprep.subr.bf16.mxu0 0
    %532 = vmatpush1.bf16.msra.mxu0 %v493
    %533 = vmatprep.subr.bf16.mxu0 0
    %534 = vmatpush1.bf16.msra.mxu0 %v494
    %535 = vmatprep.subr.bf16.mxu0 0
    %536 = vmatpush1.bf16.msra.mxu0 %v495
    %537 = vmatprep.subr.bf16.mxu0 0
    %538 = vmatpush1.bf16.msra.mxu0 %v496
    %539 = vmatprep.subr.bf16.mxu0 0
    %540 = vmatpush1.bf16.msra.mxu0 0
    %541 = vmatprep.subr.bf16.mxu0 0
    %542 = vmatpush1.bf16.msra.mxu0 0
    %543 = vmatprep.subr.bf16.mxu0 0
    %544 = vmatpush1.bf16.msra.mxu0 0
    %545 = vmatprep.subr.bf16.mxu0 0
    %546 = vmatpush1.bf16.msra.mxu0 0
    %547 = vmatprep.mubr.bf16.mxu0 %v510
    %548 = vmatmul.mubr.bf16.gmra.mrb[0].mxu0 %v400
    %v549 = vpop.f32.mrb[0].mxu0
    %v550 = vadd.f32 %v435, %v549
    %v551 = vpop.f32.mrb[0].mxu0
    %v552 = vpop.f32.mrb[0].mxu0
    %v553 = vadd.f32 %v435, %v552
    %v554 = vpop.f32.mrb[0].mxu0
    %555 = vmatprep.mubr.bf16.mxu0 %v513
    %556 = vmatmul.mubr.bf16.gmra.mrb[0].mxu0 %v404
    %v557 = vpop.f32.mrb[0].mxu0
    %v558 = vadd.f32 %v435, %v557
    %v559 = vpop.f32.mrb[0].mxu0
    %v560 = vpop.f32.mrb[0].mxu0
    %v561 = vadd.f32 %v435, %v560
    %v562 = vpop.f32.mrb[0].mxu0
    %563 = vdwg.mxu0
    %v564 = vadd.f32 %v550, %v85
    %v565 = vadd.f32 %v553, %v86
    %v566 = vadd.f32 %v558, %v87
    %v567 = vadd.f32 %v561, %v88
    %v568 = vmax.f32 %v564, 0.0
    %v569 = vmax.f32 %v565, 0.0
    %v570 = vmax.f32 %v566, 0.0
    %v571 = vmax.f32 %v567, 0.0
    %572 = vst.msk [vmem:[#allocation2] sm:$0xff] %vm186, %v568
    %573 = vst.msk [vmem:[#allocation2 + $0x8] sm:$0xff] %vm186, %v569
    %574 = vst.msk [vmem:[#allocation2 + $0x10] sm:$0xff] %vm186, %v570
    %575 = vst.msk [vmem:[#allocation2 + $0x18] sm:$0xff] %vm186, %v571
    // Predicated region
    $region22: #{tpu_custom_call.1} parent=1 // pred_check
      _
    $region23: #{tpu_custom_call.1} parent=1 // pred_check_branch
      %577 = sbr.rel (0) target = $region25
    $region24: #{tpu_custom_call.1} parent=1 // pred_region
      %s579 = ssub.s32 512, 512
      %580 = vsyncadd [#allocation3], %s579
      %s581 = sshll.u32 [#allocation2], 4
      %s582 = int_to_ptr.vmem [resolvable:$true] %s581
      %587 = dma.vmem_to_hbm [thread:$0]  %s582, 512, %s5, [#allocation3], 128, 128, 8
    $region25: #{tpu_custom_call.1} parent=1 // pred_fallthru
      _
    // Predicated region
    $region26: #{tpu_custom_call.1} parent=1 // pred_check
      _
    $region27: #{tpu_custom_call.1} parent=1 // pred_check_branch
      %589 = sbr.rel (0) target = $region29
    $region28: #{tpu_custom_call.1} parent=1 // pred_region
      %590 = dma.done [#allocation3], 512
    $region29: #{tpu_custom_call.1} parent=1 // pred_fallthru
      _
    %591 = vsyncpa [#allocation3], 1

</llo_original>
